<compile_context>
chip_gen: v7x
topology: tpu7x:2x2x1
jax: 0.10.0
libtpu: 0.0.40
codegen_flags: <defaults>
</compile_context>

<pallas_src>
import jax
import jax.numpy as jnp
from jax.experimental import pallas as pl
from jax.experimental.pallas import tpu as pltpu


def _se_kernel(x_ref, w1_ref, b1_ref, w2_ref, b2_ref, o_ref):
    # x_ref: (Bt, C, HW)   w1: (C, Cr)  b1: (1, Cr)  w2: (Cr, C)  b2: (1, C)

    # Squeeze: global average pool over the spatial (lane) axis -> (Bt, C).
    z = jnp.mean(x_ref[...].astype(jnp.float32), axis=2)

    # Excite: Linear -> ReLU -> Linear -> Sigmoid, all in f32 (tiny).
    h = jnp.dot(z, w1_ref[...].astype(jnp.float32),
                preferred_element_type=jnp.float32)
    h = jnp.maximum(h + b1_ref[...].astype(jnp.float32), 0.0)        # (Bt, Cr)
    s = jnp.dot(h, w2_ref[...].astype(jnp.float32),
                preferred_element_type=jnp.float32)
    s = jax.nn.sigmoid(s + b2_ref[...].astype(jnp.float32))          # (Bt, C)

    # Re-weight channels.  Re-read the tile here so it is not kept live as a
    # value across the matmuls above (keeps vreg pressure independent of Bt).
    o_ref[...] = (x_ref[...] * s[:, :, None].astype(x_ref.dtype)).astype(o_ref.dtype)


def squeeze_and_excite(x, w1, b1, w2, b2, *, block_bytes_budget=6 * 1024 * 1024):
    """x: (B, C, H, W). Weights follow the y = z @ W + b convention."""
    B, C, H, W = x.shape
    HW = H * W
    Cr = w1.shape[1]

    x_flat = x.reshape(B, C, HW)
    b1_2d = b1.reshape(1, Cr)
    b2_2d = b2.reshape(1, C)

    itemsize = jnp.dtype(x.dtype).itemsize
    per_image_bytes = C * HW * itemsize

    # --- pick the batch tile Bt -------------------------------------------
    bt = max(1, block_bytes_budget // per_image_bytes)
    if B >= 2:
        # Keep at least 2 parallel grid steps so v7x megacore gets work.
        bt = min(bt, (B + 1) // 2)
    bt = min(bt, B)
    while B % bt:  # keep the grid exact (no padded batch rows)
        bt -= 1
    grid = (B // bt,)

    # --- VMEM budget & scheduler hints ------------------------------------
    weight_bytes = (w1.size + b1.size + w2.size + b2.size) * 4
    block_bytes = bt * per_image_bytes
    # double-buffered input tile + double-buffered output tile + weights.
    vmem_limit = 4 * block_bytes + 2 * weight_bytes + (4 << 20)
    vmem_limit = int(min(max(vmem_limit, 16 << 20), 48 << 20))

    cost = pl.CostEstimate(
        flops=2 * B * C * Cr * 2 + B * C * HW,       # two tiny matmuls + reweight
        transcendentals=B * C,                        # sigmoid
        bytes_accessed=2 * B * C * HW * itemsize + weight_bytes,
    )

    out_flat = pl.pallas_call(
        _se_kernel,
        out_shape=jax.ShapeDtypeStruct((B, C, HW), x.dtype),
        grid_spec=pltpu.PrefetchScalarGridSpec(
            num_scalar_prefetch=0,
            grid=grid,
            in_specs=[
                pl.BlockSpec((bt, C, HW), lambda b: (b, 0, 0)),
                pl.BlockSpec((C, Cr), lambda b: (0, 0)),
                pl.BlockSpec((1, Cr), lambda b: (0, 0)),
                pl.BlockSpec((Cr, C), lambda b: (0, 0)),
                pl.BlockSpec((1, C), lambda b: (0, 0)),
            ],
            out_specs=pl.BlockSpec((bt, C, HW), lambda b: (b, 0, 0)),
        ),
        compiler_params=pltpu.CompilerParams(
            dimension_semantics=("parallel",),
            vmem_limit_bytes=vmem_limit,
        ),
        cost_estimate=cost,
    )(x_flat, w1, b1_2d, w2, b2_2d)

    return out_flat.reshape(B, C, H, W)


def _reference(x, w1, b1, w2, b2):
    z = x.mean(axis=(2, 3))                                # (B, C)
    h = jnp.maximum(z @ w1 + b1, 0.0)                      # (B, C//r)
    s = jax.nn.sigmoid(h @ w2 + b2)                        # (B, C)
    return x * s[:, :, None, None]


if __name__ == "__main__":
    # Small shapes consistent with the module: B=2, C=64, H=W=16, r=16.
    B, C, H, W = 2, 64, 16, 16
    r = 16
    Cr = C // r

    key = jax.random.PRNGKey(0)
    kx, kw1, kb1, kw2, kb2 = jax.random.split(key, 5)

    x = jax.random.normal(kx, (B, C, H, W), dtype=jnp.float32)
    # Deterministic synthetic parameters (Linear(C, C//r) and Linear(C//r, C)).
    w1 = jax.random.normal(kw1, (C, Cr), dtype=jnp.float32) * 0.1
    b1 = jax.random.normal(kb1, (Cr,), dtype=jnp.float32) * 0.1
    w2 = jax.random.normal(kw2, (Cr, C), dtype=jnp.float32) * 0.1
    b2 = jax.random.normal(kb2, (C,), dtype=jnp.float32) * 0.1

    out = squeeze_and_excite(x, w1, b1, w2, b2)
    out = jax.block_until_ready(out)

    ref = _reference(x, w1, b1, w2, b2)
    assert out.shape == (B, C, H, W)
    assert jnp.allclose(out, ref, atol=1e-5, rtol=1e-5), "mismatch vs reference"

    print("KERNEL_OK")
</pallas_src>

<mosaic_0001>
module attributes {stable_mosaic.version = 11 : i64} {
  func.func @_se_kernel(%arg0: i32, %arg1: memref<1x64x256xf32, #tpu.memory_space<vmem>>, %arg2: memref<64x4xf32, #tpu.memory_space<vmem>>, %arg3: memref<1x4xf32, #tpu.memory_space<vmem>>, %arg4: memref<4x64xf32, #tpu.memory_space<vmem>>, %arg5: memref<1x64xf32, #tpu.memory_space<vmem>>, %arg6: memref<1x64x256xf32, #tpu.memory_space<vmem>>) attributes {dimension_semantics = [#tpu.dimension_semantics<parallel>], iteration_bounds = array<i64: 2>, scalar_prefetch = 0 : i64, scratch_operands = 0 : i64, tpu.core_type = #tpu.core_type<tc>, window_params = [{transform_indices = @transform_0, window_bounds = array<i64: 1, 64, 256>}, {pipeline_mode = #tpu.pipeline_mode<synchronous>, transform_indices = @transform_1, window_bounds = array<i64: 64, 4>}, {pipeline_mode = #tpu.pipeline_mode<synchronous>, transform_indices = @transform_2, window_bounds = array<i64: 1, 4>}, {pipeline_mode = #tpu.pipeline_mode<synchronous>, transform_indices = @transform_3, window_bounds = array<i64: 4, 64>}, {pipeline_mode = #tpu.pipeline_mode<synchronous>, transform_indices = @transform_4, window_bounds = array<i64: 1, 64>}, {transform_indices = @transform_5, window_bounds = array<i64: 1, 64, 256>}]} {
    %c0 = arith.constant 0 : index
    %c0_0 = arith.constant 0 : index
    %c0_1 = arith.constant 0 : index
    %0 = vector.load %arg1[%c0, %c0_0, %c0_1] : memref<1x64x256xf32, #tpu.memory_space<vmem>>, vector<1x64x256xf32>
    %cst = arith.constant dense<0.000000e+00> : vector<1x64xf32>
    %1 = vector.multi_reduction <add>, %0, %cst [2] : vector<1x64x256xf32> to vector<1x64xf32>
    %cst_2 = arith.constant 2.560000e+02 : f32
    %2 = vector.broadcast %cst_2 : f32 to vector<1x64xf32>
    %3 = arith.divf %1, %2 : vector<1x64xf32>
    %c0_3 = arith.constant 0 : index
    %c0_4 = arith.constant 0 : index
    %4 = vector.load %arg2[%c0_3, %c0_4] : memref<64x4xf32, #tpu.memory_space<vmem>>, vector<64x4xf32>
    %cst_5 = arith.constant dense<0.000000e+00> : vector<1x4xf32>
    %5 = tpu.matmul %3, %4, %cst_5 {dimension_numbers = #tpu.dot_dimension_numbers<[1], [0], [0], [1], [0, 0, 1, 1], [], []>} : vector<1x64xf32>, vector<64x4xf32>, vector<1x4xf32> -> vector<1x4xf32>
    %c0_6 = arith.constant 0 : index
    %c0_7 = arith.constant 0 : index
    %6 = vector.load %arg3[%c0_6, %c0_7] : memref<1x4xf32, #tpu.memory_space<vmem>>, vector<1x4xf32>
    %7 = arith.addf %5, %6 : vector<1x4xf32>
    %cst_8 = arith.constant 0.000000e+00 : f32
    %8 = vector.broadcast %cst_8 : f32 to vector<1x4xf32>
    %9 = arith.maximumf %7, %8 : vector<1x4xf32>
    %c0_9 = arith.constant 0 : index
    %c0_10 = arith.constant 0 : index
    %10 = vector.load %arg4[%c0_9, %c0_10] : memref<4x64xf32, #tpu.memory_space<vmem>>, vector<4x64xf32>
    %cst_11 = arith.constant dense<0.000000e+00> : vector<1x64xf32>
    %11 = tpu.matmul %9, %10, %cst_11 {dimension_numbers = #tpu.dot_dimension_numbers<[1], [0], [0], [1], [0, 0, 1, 1], [], []>} : vector<1x4xf32>, vector<4x64xf32>, vector<1x64xf32> -> vector<1x64xf32>
    %c0_12 = arith.constant 0 : index
    %c0_13 = arith.constant 0 : index
    %12 = vector.load %arg5[%c0_12, %c0_13] : memref<1x64xf32, #tpu.memory_space<vmem>>, vector<1x64xf32>
    %13 = arith.addf %11, %12 : vector<1x64xf32>
    %14 = arith.negf %13 : vector<1x64xf32>
    %15 = math.exp %14 : vector<1x64xf32>
    %cst_14 = arith.constant 1.000000e+00 : f32
    %16 = vector.broadcast %cst_14 : f32 to vector<1x64xf32>
    %17 = arith.addf %16, %15 : vector<1x64xf32>
    %18 = arith.divf %16, %17 : vector<1x64xf32>
    %c0_15 = arith.constant 0 : index
    %c0_16 = arith.constant 0 : index
    %c0_17 = arith.constant 0 : index
    %19 = vector.load %arg1[%c0_15, %c0_16, %c0_17] : memref<1x64x256xf32, #tpu.memory_space<vmem>>, vector<1x64x256xf32>
    %20 = vector.shape_cast %18 : vector<1x64xf32> to vector<1x64x1xf32>
    %21 = vector.broadcast %20 : vector<1x64x1xf32> to vector<1x64x256xf32>
    %22 = arith.mulf %19, %21 : vector<1x64x256xf32>
    %c0_18 = arith.constant 0 : index
    %c0_19 = arith.constant 0 : index
    %c0_20 = arith.constant 0 : index
    %23 = vector.load %arg6[%c0_18, %c0_19, %c0_20] : memref<1x64x256xf32, #tpu.memory_space<vmem>>, vector<1x64x256xf32>
    tpu.vector_store %arg6[%c0_18, %c0_19, %c0_20], %22 {strides = array<i32>} : memref<1x64x256xf32, #tpu.memory_space<vmem>>, vector<1x64x256xf32>,
    return
  }
  func.func @transform_0(%arg0: i32) -> (i32, i32, i32) {
    %c0_i32 = arith.constant 0 : i32
    %c0_i32_0 = arith.constant 0 : i32
    %c0_i32_1 = arith.constant 0 : i32
    return %arg0, %c0_i32, %c0_i32_0 : i32, i32, i32
  }
  func.func @transform_1(%arg0: i32) -> (i32, i32) {
    %c0_i32 = arith.constant 0 : i32
    %c0_i32_0 = arith.constant 0 : i32
    %c0_i32_1 = arith.constant 0 : i32
    return %c0_i32, %c0_i32_0 : i32, i32
  }
  func.func @transform_2(%arg0: i32) -> (i32, i32) {
    %c0_i32 = arith.constant 0 : i32
    %c0_i32_0 = arith.constant 0 : i32
    %c0_i32_1 = arith.constant 0 : i32
    return %c0_i32, %c0_i32_0 : i32, i32
  }
  func.func @transform_3(%arg0: i32) -> (i32, i32) {
    %c0_i32 = arith.constant 0 : i32
    %c0_i32_0 = arith.constant 0 : i32
    %c0_i32_1 = arith.constant 0 : i32
    return %c0_i32, %c0_i32_0 : i32, i32
  }
  func.func @transform_4(%arg0: i32) -> (i32, i32) {
    %c0_i32 = arith.constant 0 : i32
    %c0_i32_0 = arith.constant 0 : i32
    %c0_i32_1 = arith.constant 0 : i32
    return %c0_i32, %c0_i32_0 : i32, i32
  }
  func.func @transform_5(%arg0: i32) -> (i32, i32, i32) {
    %c0_i32 = arith.constant 0 : i32
    %c0_i32_0 = arith.constant 0 : i32
    %c0_i32_1 = arith.constant 0 : i32
    return %arg0, %c0_i32, %c0_i32_0 : i32, i32, i32
  }
}

</mosaic_0001>

<llo_original>
// kernel: tpu_custom_call.1
$region0: #{tpu_custom_call.1}
  #allocation0 [shape = 'u32[]', space=smem, size = 0x4, offset = 0x4, fixed_abs, tag = 'smem constant byte address 0x4 - core index']
  #allocation1 [shape = 'u32[144,128]{1,0:T(1,128)}', space=vmem, size = 0x12000, scoped, tag = 'internal scratch']
  %s0 = inlined_call_operand.hbm [shape: f32[2,64,256], index: 0, kind: input, shape index: {}]
  %s1 = inlined_call_operand.vmem [shape: f32[64,4], index: 1, kind: input, shape index: {}]
  %s2 = inlined_call_operand.vmem [shape: f32[1,4], index: 2, kind: input, shape index: {}]
  %s3 = inlined_call_operand.vmem [shape: f32[4,64], index: 3, kind: input, shape index: {}]
  %s4 = inlined_call_operand.vmem [shape: f32[1,64], index: 4, kind: input, shape index: {}]
  %s5 = inlined_call_operand.hbm [shape: f32[2,64,256], index: 5, kind: output, shape index: {}]
  %s6 = sld [smem:[#allocation0]]
  $region57: #{tpu_custom_call.1} parent=0
    _
  %s8 = ssub.s32 1, %s6
  %s9 = scalar_select 0, %s8, %s6
  $region1: #{tpu_custom_call.1} parent=0
    #allocation2 [shape = 'u8[131072]{0}', space=vmem, size = 0x20000, scoped, tag = 'input window, operand 0']
    #allocation3 [shape = 's32[2]{0}', space=sflag, size = 0x8, scoped, tag = 'scoped memory for tpu_custom_call.1']
    #allocation4 [shape = 's32[2]{0}', space=sflag, size = 0x8, scoped, tag = 'scoped memory for tpu_custom_call.1']
    #allocation5 [shape = 'u8[131072]{0}', space=vmem, size = 0x20000, scoped, tag = 'output window, operand 0']
    %10 = vsyncpa [#allocation3], 0
    %s11 = scalar_lea.sflag [#allocation3], 1
    %12 = vsyncpa %s11, 0
    %13 = vsyncpa [#allocation4], 0
    %s14 = scalar_lea.sflag [#allocation4], 1
    %15 = vsyncpa %s14, 0
    loop: start=0, step=1, limit=4
    $region2: #{tpu_custom_call.1} parent=1 // loop_pre_header
      _
    $region3: #{tpu_custom_call.1} parent=1 // loop_header
      %s17 = sphi 0, %s21
      %p18 = scmp.ge.s32.totalorder %s17, 4
      %s27 = sphi 0, %s29
      %s30 = sphi 0, %s27
      %s31 = sphi 0, %s30
      %s47 = sphi 0, %s31
      %s51 = sphi 0, %s51
      %s53 = sphi 0, %s51
      %s54 = sphi 0, %s53
      %s68 = sphi 0, %s54
      %s72 = sphi 0, %s72
      %s74 = sphi 0, %s72
      %s75 = sphi 0, %s74
      %s89 = sphi 0, %s75
      %s93 = sphi 0, %s93
      %s95 = sphi 0, %s93
      %s96 = sphi 0, %s95
      %s110 = sphi 0, %s96
      %s114 = sphi 0, %s114
      %s116 = sphi 0, %s114
      %s117 = sphi 0, %s116
      %s131 = sphi 0, %s117
      %s137 = sphi 0, %s139
      %s140 = sphi 0, %s137
      %s141 = sphi 0, %s140
      %s157 = sphi 0, %s141
    $region4: #{tpu_custom_call.1} parent=1 // loop_header_branch
      %20 = sbr.rel (%p18) target = $region8
    $region5: #{tpu_custom_call.1} parent=1 // loop_body
      %s22 = ssub.s32 %s17, 1
      %s23 = ssub.s32 %s17, 2
      %s24 = sadd.s32 %s17, 1
      %s25 = ssub.s32 %s17, %s24
      %p26 = scmp.eq.s32.totalorder %s25, 0
      %s28 = sadd.s32 %s27, 1
      %s29 = scalar_select %p26, %s27, %s28
      %p32 = pneg %p26
      %p33 = scmp.eq.s32.totalorder %s17, 1
      %p34 = por %p32, %p33
      %p35 = scmp.ne.s32.totalorder %s27, %s30
      %p36 = scmp.eq.s32.totalorder %s17, 0
      %p37 = por %p35, %p36
      %p38 = scmp.ne.s32.totalorder %s27, %s30
      %p39 = scmp.eq.s32.totalorder %s22, 1
      %p40 = por %p38, %p39
      %p41 = scmp.ne.s32.totalorder %s30, %s31
      %p42 = scmp.eq.s32.totalorder %s22, 0
      %p43 = por %p41, %p42
      %p44 = scmp.ne.s32.totalorder %s30, %s31
      %p45 = scmp.eq.s32.totalorder %s23, 1
      %p46 = por %p44, %p45
      %p48 = scmp.ne.s32.totalorder %s31, %s47
      %p49 = scmp.eq.s32.totalorder %s23, 0
      %p50 = por %p48, %p49
      %s52 = sadd.s32 %s51, 1
      %p55 = scmp.eq.s32.totalorder %s17, 1
      %p56 = scmp.ne.s32.totalorder %s51, %s53
      %p57 = scmp.eq.s32.totalorder %s17, 0
      %p58 = por %p56, %p57
      %p59 = scmp.ne.s32.totalorder %s51, %s53
      %p60 = scmp.eq.s32.totalorder %s22, 1
      %p61 = por %p59, %p60
      %p62 = scmp.ne.s32.totalorder %s53, %s54
      %p63 = scmp.eq.s32.totalorder %s22, 0
      %p64 = por %p62, %p63
      %p65 = scmp.ne.s32.totalorder %s53, %s54
      %p66 = scmp.eq.s32.totalorder %s23, 1
      %p67 = por %p65, %p66
      %p69 = scmp.ne.s32.totalorder %s54, %s68
      %p70 = scmp.eq.s32.totalorder %s23, 0
      %p71 = por %p69, %p70
      %s73 = sadd.s32 %s72, 1
      %p76 = scmp.eq.s32.totalorder %s17, 1
      %p77 = scmp.ne.s32.totalorder %s72, %s74
      %p78 = scmp.eq.s32.totalorder %s17, 0
      %p79 = por %p77, %p78
      %p80 = scmp.ne.s32.totalorder %s72, %s74
      %p81 = scmp.eq.s32.totalorder %s22, 1
      %p82 = por %p80, %p81
      %p83 = scmp.ne.s32.totalorder %s74, %s75
      %p84 = scmp.eq.s32.totalorder %s22, 0
      %p85 = por %p83, %p84
      %p86 = scmp.ne.s32.totalorder %s74, %s75
      %p87 = scmp.eq.s32.totalorder %s23, 1
      %p88 = por %p86, %p87
      %p90 = scmp.ne.s32.totalorder %s75, %s89
      %p91 = scmp.eq.s32.totalorder %s23, 0
      %p92 = por %p90, %p91
      %s94 = sadd.s32 %s93, 1
      %p97 = scmp.eq.s32.totalorder %s17, 1
      %p98 = scmp.ne.s32.totalorder %s93, %s95
      %p99 = scmp.eq.s32.totalorder %s17, 0
      %p100 = por %p98, %p99
      %p101 = scmp.ne.s32.totalorder %s93, %s95
      %p102 = scmp.eq.s32.totalorder %s22, 1
      %p103 = por %p101, %p102
      %p104 = scmp.ne.s32.totalorder %s95, %s96
      %p105 = scmp.eq.s32.totalorder %s22, 0
      %p106 = por %p104, %p105
      %p107 = scmp.ne.s32.totalorder %s95, %s96
      %p108 = scmp.eq.s32.totalorder %s23, 1
      %p109 = por %p107, %p108
      %p111 = scmp.ne.s32.totalorder %s96, %s110
      %p112 = scmp.eq.s32.totalorder %s23, 0
      %p113 = por %p111, %p112
      %s115 = sadd.s32 %s114, 1
      %p118 = scmp.eq.s32.totalorder %s17, 1
      %p119 = scmp.ne.s32.totalorder %s114, %s116
      %p120 = scmp.eq.s32.totalorder %s17, 0
      %p121 = por %p119, %p120
      %p122 = scmp.ne.s32.totalorder %s114, %s116
      %p123 = scmp.eq.s32.totalorder %s22, 1
      %p124 = por %p122, %p123
      %p125 = scmp.ne.s32.totalorder %s116, %s117
      %p126 = scmp.eq.s32.totalorder %s22, 0
      %p127 = por %p125, %p126
      %p128 = scmp.ne.s32.totalorder %s116, %s117
      %p129 = scmp.eq.s32.totalorder %s23, 1
      %p130 = por %p128, %p129
      %p132 = scmp.ne.s32.totalorder %s117, %s131
      %p133 = scmp.eq.s32.totalorder %s23, 0
      %p134 = por %p132, %p133
      %s135 = ssub.s32 %s17, %s24
      %p136 = scmp.eq.s32.totalorder %s135, 0
      %s138 = sadd.s32 %s137, 1
      %s139 = scalar_select %p136, %s137, %s138
      %p142 = pneg %p136
      %p143 = scmp.eq.s32.totalorder %s17, 1
      %p144 = por %p142, %p143
      %p145 = scmp.ne.s32.totalorder %s137, %s140
      %p146 = scmp.eq.s32.totalorder %s17, 0
      %p147 = por %p145, %p146
      %p148 = scmp.ne.s32.totalorder %s137, %s140
      %p149 = scmp.eq.s32.totalorder %s22, 1
      %p150 = por %p148, %p149
      %p151 = scmp.ne.s32.totalorder %s140, %s141
      %p152 = scmp.eq.s32.totalorder %s22, 0
      %p153 = por %p151, %p152
      %p154 = scmp.ne.s32.totalorder %s140, %s141
      %p155 = scmp.eq.s32.totalorder %s23, 1
      %p156 = por %p154, %p155
      %p158 = scmp.ne.s32.totalorder %s141, %s157
      %p159 = scmp.eq.s32.totalorder %s23, 0
      %p160 = por %p158, %p159
      %p161 = scmp.le.s32.totalorder 1, %s17
      %p162 = scmp.lt.s32.totalorder %s17, 3
      %p163 = pnand %p161, %p162
      %p164 = pneg %p163
      // Predicated region
      $region9: #{tpu_custom_call.1} parent=5 // pred_check
        _
      $region10: #{tpu_custom_call.1} parent=5 // pred_check_branch
        %166 = sbr.rel (%p163) target = $region12
      $region11: #{tpu_custom_call.1} parent=5 // pred_region
        %s167 = ssub.s32 %s17, 1
        // Predicated region
        $region13: #{tpu_custom_call.1} parent=11 // pred_check
          %p168 = pneg %p64
        $region14: #{tpu_custom_call.1} parent=11 // pred_check_branch
          %170 = sbr.rel (%p168) target = $region16
        $region15: #{tpu_custom_call.1} parent=11 // pred_region
          _
        $region16: #{tpu_custom_call.1} parent=11 // pred_fallthru
          _
        // Predicated region
        $region17: #{tpu_custom_call.1} parent=11 // pred_check
          %p171 = pneg %p85
        $region18: #{tpu_custom_call.1} parent=11 // pred_check_branch
          %173 = sbr.rel (%p171) target = $region20
        $region19: #{tpu_custom_call.1} parent=11 // pred_region
          _
        $region20: #{tpu_custom_call.1} parent=11 // pred_fallthru
          _
        // Predicated region
        $region21: #{tpu_custom_call.1} parent=11 // pred_check
          %p174 = pneg %p106
        $region22: #{tpu_custom_call.1} parent=11 // pred_check_branch
          %176 = sbr.rel (%p174) target = $region24
        $region23: #{tpu_custom_call.1} parent=11 // pred_region
          _
        $region24: #{tpu_custom_call.1} parent=11 // pred_fallthru
          _
        // Predicated region
        $region25: #{tpu_custom_call.1} parent=11 // pred_check
          %p177 = pneg %p127
        $region26: #{tpu_custom_call.1} parent=11 // pred_check_branch
          %179 = sbr.rel (%p177) target = $region28
        $region27: #{tpu_custom_call.1} parent=11 // pred_region
          _
        $region28: #{tpu_custom_call.1} parent=11 // pred_fallthru
          _
      $region12: #{tpu_custom_call.1} parent=5 // pred_fallthru
        _
      %p180 = scmp.lt.s32.totalorder %s17, 2
      // Predicated region
      $region29: #{tpu_custom_call.1} parent=5 // pred_check
        %p181 = pneg %p180
      $region30: #{tpu_custom_call.1} parent=5 // pred_check_branch
        %183 = sbr.rel (%p181) target = $region32
      $region31: #{tpu_custom_call.1} parent=5 // pred_region
        // Predicated region
        $region33: #{tpu_custom_call.1} parent=31 // pred_check
          %p184 = pneg %p37
        $region34: #{tpu_custom_call.1} parent=31 // pred_check_branch
          %186 = sbr.rel (%p184) target = $region36
        $region35: #{tpu_custom_call.1} parent=31 // pred_region
          %s187 = sand.u32 %s27, 1
          %s188 = scalar_lea.sflag [#allocation3], %s187
          %s189 = sand.u32 %s27, 1
          %s190 = smul.addr %s189, 128
          %s191 = scalar_lea.vmem [#allocation2], %s190
          %s193 = ssub.s32 2048, 2048
          %194 = vsyncadd %s188, %s193
          %s195 = smul.addr %s17, 16
          %s196 = smul.addr %s195, 128
          %s197 = scalar_lea.hbm %s0, %s196
          %s198 = sshll.u32 %s191, 4
          %s199 = int_to_ptr.vmem [resolvable:$true] %s198
          %204 = dma.hbm_to_vmem [thread:$0]  %s197, 2048, %s199, %s188, 256, 256, 16
        $region36: #{tpu_custom_call.1} parent=31 // pred_fallthru
          _
      $region32: #{tpu_custom_call.1} parent=5 // pred_fallthru
        _
      %p205 = scmp.le.s32.totalorder 1, %s17
      %p206 = scmp.lt.s32.totalorder %s17, 3
      %p207 = pnand %p205, %p206
      %p208 = pneg %p207
      // Predicated region
      $region37: #{tpu_custom_call.1} parent=5 // pred_check
        _
      $region38: #{tpu_custom_call.1} parent=5 // pred_check_branch
        %210 = sbr.rel (%p207) target = $region40
      $region39: #{tpu_custom_call.1} parent=5 // pred_region
        %s211 = ssub.s32 %s17, 1
        %s212 = sand.u32 %s30, 1
        %s213 = scalar_lea.sflag [#allocation3], %s212
        %s214 = sand.u32 %s30, 1
        %s215 = smul.addr %s214, 128
        %s216 = scalar_lea.vmem [#allocation2], %s215
        // Predicated region
        $region41: #{tpu_custom_call.1} parent=39 // pred_check
          %p217 = pneg %p43
        $region42: #{tpu_custom_call.1} parent=39 // pred_check_branch
          %219 = sbr.rel (%p217) target = $region44
        $region43: #{tpu_custom_call.1} parent=39 // pred_region
          %220 = dma.done %s213, 2048
        $region44: #{tpu_custom_call.1} parent=39 // pred_fallthru
          _
        %s221 = sand.u32 %s30, 1
        %s222 = scalar_lea.sflag [#allocation3], %s221
        %s223 = sand.u32 %s30, 1
        %s224 = smul.addr %s223, 128
        %s225 = scalar_lea.vmem [#allocation2], %s224
        %p226 = pneg %p43
        %p227 = pneg %p40
        %p228 = pneg %p64
        %p229 = pneg %p61
        %p230 = pneg %p85
        %p231 = pneg %p82
        %p232 = pneg %p106
        %p233 = pneg %p103
        %p234 = pneg %p127
        %p235 = pneg %p124
        %p236 = pneg %p153
        %p237 = pneg %p150
        %s238 = sand.u32 %s140, 1
        %s239 = scalar_lea.sflag [#allocation4], %s238
        %s240 = sand.u32 %s140, 1
        %s241 = smul.addr %s240, 128
        %s242 = scalar_lea.vmem [#allocation5], %s241
        %v243 = vld [vmem:[%s216] sm:$0xff]
        %v244 = vld [vmem:[%s216 + $0x8] sm:$0xff]
        %v245 = vld [vmem:[%s216 + $0x10] sm:$0xff]
        %v246 = vld [vmem:[%s216 + $0x18] sm:$0xff]
        %v247 = vld [vmem:[%s216 + $0x20] sm:$0xff]
        %v248 = vld [vmem:[%s216 + $0x28] sm:$0xff]
        %v249 = vld [vmem:[%s216 + $0x30] sm:$0xff]
        %v250 = vld [vmem:[%s216 + $0x38] sm:$0xff]
        %v251 = vld [vmem:[%s216 + $0x40] sm:$0xff]
        %v252 = vld [vmem:[%s216 + $0x48] sm:$0xff]
        %v253 = vld [vmem:[%s216 + $0x50] sm:$0xff]
        %v254 = vld [vmem:[%s216 + $0x58] sm:$0xff]
        %v255 = vld [vmem:[%s216 + $0x60] sm:$0xff]
        %v256 = vld [vmem:[%s216 + $0x68] sm:$0xff]
        %v257 = vld [vmem:[%s216 + $0x70] sm:$0xff]
        %v258 = vld [vmem:[%s216 + $0x78] sm:$0xff]
        %v259 = vadd.f32 %v243, %v244
        %260 = vadd.xlane.f32.xlu0 %v259
        %v261 = vpop.xlane.xlu0 %260
        %v262 = vadd.f32 %v245, %v246
        %263 = vadd.xlane.f32.xlu0 %v262
        %v264 = vpop.xlane.xlu0 %263
        %v265 = vadd.f32 %v247, %v248
        %266 = vadd.xlane.f32.xlu0 %v265
        %v267 = vpop.xlane.xlu0 %266
        %v268 = vadd.f32 %v249, %v250
        %269 = vadd.xlane.f32.xlu0 %v268
        %v270 = vpop.xlane.xlu0 %269
        %v271 = vadd.f32 %v251, %v252
        %272 = vadd.xlane.f32.xlu0 %v271
        %v273 = vpop.xlane.xlu0 %272
        %v274 = vadd.f32 %v253, %v254
        %275 = vadd.xlane.f32.xlu0 %v274
        %v276 = vpop.xlane.xlu0 %275
        %v277 = vadd.f32 %v255, %v256
        %278 = vadd.xlane.f32.xlu0 %v277
        %v279 = vpop.xlane.xlu0 %278
        %v280 = vadd.f32 %v257, %v258
        %281 = vadd.xlane.f32.xlu0 %v280
        %v282 = vpop.xlane.xlu0 %281
        %v283 = vrcp.pop 256.0
        %v284 = vmul.f32 %v261, %v283
        %v285 = vmul.f32 %v264, %v283
        %v286 = vmul.f32 %v267, %v283
        %v287 = vmul.f32 %v270, %v283
        %v288 = vmul.f32 %v273, %v283
        %v289 = vmul.f32 %v276, %v283
        %v290 = vmul.f32 %v279, %v283
        %v291 = vmul.f32 %v282, %v283
        %v292 = vld [vmem:[%s1] sm:$0xff]
        %v293 = vld [vmem:[%s1 + $0x8] sm:$0xff]
        %v294 = vld [vmem:[%s1 + $0x10] sm:$0xff]
        %v295 = vld [vmem:[%s1 + $0x18] sm:$0xff]
        %v296 = vld [vmem:[%s1 + $0x20] sm:$0xff]
        %v297 = vld [vmem:[%s1 + $0x28] sm:$0xff]
        %v298 = vld [vmem:[%s1 + $0x30] sm:$0xff]
        %v299 = vld [vmem:[%s1 + $0x38] sm:$0xff]
        %v300 = vld [vmem:[%s2] sm:$0x1]
        %v309 = vlaneseq
        %v310 = vand.u32 %v309, 127
        %v311 = vlaneseq
        %v312 = vshrl.u32 %v311, 7
        %v313 = vsub.s32 %v310, %v312
        %v314 = vrot.slane %v284, %v313
        %v315 = vadd.s32 %v310, 4294967288
        %v316 = vlaneseq
        %v317 = vshrl.u32 %v316, 7
        %v318 = vsub.s32 %v315, %v317
        %v319 = vrot.slane %v285, %v318
        %vm320 = vcmask 130112
        %v321 = vsel %vm320, %v319, %v314
        %v322 = vadd.s32 %v310, 4294967280
        %v323 = vlaneseq
        %v324 = vshrl.u32 %v323, 7
        %v325 = vsub.s32 %v322, %v324
        %v326 = vrot.slane %v286, %v325
        %vm327 = vcmask 195712
        %v328 = vsel %vm327, %v326, %v321
        %v329 = vadd.s32 %v310, 4294967272
        %v330 = vlaneseq
        %v331 = vshrl.u32 %v330, 7
        %v332 = vsub.s32 %v329, %v331
        %v333 = vrot.slane %v287, %v332
        %vm334 = vcmask 261312
        %v335 = vsel %vm334, %v333, %v328
        %v336 = vadd.s32 %v310, 4294967264
        %v337 = vlaneseq
        %v338 = vshrl.u32 %v337, 7
        %v339 = vsub.s32 %v336, %v338
        %v340 = vrot.slane %v288, %v339
        %vm341 = vcmask 326912
        %v342 = vsel %vm341, %v340, %v335
        %v343 = vadd.s32 %v310, 4294967256
        %v344 = vlaneseq
        %v345 = vshrl.u32 %v344, 7
        %v346 = vsub.s32 %v343, %v345
        %v347 = vrot.slane %v289, %v346
        %vm348 = vcmask 392512
        %v349 = vsel %vm348, %v347, %v342
        %v350 = vadd.s32 %v310, 4294967248
        %v351 = vlaneseq
        %v352 = vshrl.u32 %v351, 7
        %v353 = vsub.s32 %v350, %v352
        %v354 = vrot.slane %v290, %v353
        %vm355 = vcmask 458112
        %v356 = vsel %vm355, %v354, %v349
        %v357 = vadd.s32 %v310, 4294967240
        %v358 = vlaneseq
        %v359 = vshrl.u32 %v358, 7
        %v360 = vsub.s32 %v357, %v359
        %v361 = vrot.slane %v291, %v360
        %vm362 = vcmask 523712
        %v363 = vsel %vm362, %v361, %v356
        %vm364 = vcmask 523264
        %v365 = vsel %vm364, %v363, 0
        %367 = vmatprep.subr.mxu0 0.0
        %368 = vmatpush1.msra.mxu0 %v292
        %369 = vmatprep.subr.mxu0 0.0
        %370 = vmatpush1.msra.mxu0 %v293
        %371 = vmatprep.subr.mxu0 0.0
        %372 = vmatpush1.msra.mxu0 %v294
        %373 = vmatprep.subr.mxu0 0.0
        %374 = vmatpush1.msra.mxu0 %v295
        %375 = vmatprep.subr.mxu0 0.0
        %376 = vmatpush1.msra.mxu0 %v296
        %377 = vmatprep.subr.mxu0 0.0
        %378 = vmatpush1.msra.mxu0 %v297
        %379 = vmatprep.subr.mxu0 0.0
        %380 = vmatpush1.msra.mxu0 %v298
        %381 = vmatprep.subr.mxu0 0.0
        %382 = vmatpush1.msra.mxu0 %v299
        %383 = vmatprep.subr.mxu0 0.0
        %384 = vmatpush1.msra.mxu0 0.0
        %385 = vmatprep.subr.mxu0 0.0
        %386 = vmatpush1.msra.mxu0 0.0
        %387 = vmatprep.subr.mxu0 0.0
        %388 = vmatpush1.msra.mxu0 0.0
        %389 = vmatprep.subr.mxu0 0.0
        %390 = vmatpush1.msra.mxu0 0.0
        %391 = vmatprep.subr.mxu0 0.0
        %392 = vmatpush1.msra.mxu0 0.0
        %393 = vmatprep.subr.mxu0 0.0
        %394 = vmatpush1.msra.mxu0 0.0
        %395 = vmatprep.subr.mxu0 0.0
        %396 = vmatpush1.msra.mxu0 0.0
        %397 = vmatprep.subr.mxu0 0.0
        %398 = vmatpush1.msra.mxu0 0.0
        %399 = vmatprep.subr.mxu0 0.0
        %400 = vmatpush1.msra.mxu0 0.0
        %401 = vmatprep.subr.mxu0 0.0
        %402 = vmatpush1.msra.mxu0 0.0
        %403 = vmatprep.subr.mxu0 0.0
        %404 = vmatpush1.msra.mxu0 0.0
        %405 = vmatprep.subr.mxu0 0.0
        %406 = vmatpush1.msra.mxu0 0.0
        %407 = vmatprep.subr.mxu0 0.0
        %408 = vmatpush1.msra.mxu0 0.0
        %409 = vmatprep.subr.mxu0 0.0
        %410 = vmatpush1.msra.mxu0 0.0
        %411 = vmatprep.subr.mxu0 0.0
        %412 = vmatpush1.msra.mxu0 0.0
        %413 = vmatprep.subr.mxu0 0.0
        %414 = vmatpush1.msra.mxu0 0.0
        %415 = vmatprep.subr.mxu0 0.0
        %416 = vmatpush1.msra.mxu0 0.0
        %417 = vmatprep.subr.mxu0 0.0
        %418 = vmatpush1.msra.mxu0 0.0
        %419 = vmatprep.subr.mxu0 0.0
        %420 = vmatpush1.msra.mxu0 0.0
        %421 = vmatprep.subr.mxu0 0.0
        %422 = vmatpush1.msra.mxu0 0.0
        %423 = vmatprep.subr.mxu0 0.0
        %424 = vmatpush1.msra.mxu0 0.0
        %425 = vmatprep.subr.mxu0 0.0
        %426 = vmatpush1.msra.mxu0 0.0
        %427 = vmatprep.subr.mxu0 0.0
        %428 = vmatpush1.msra.mxu0 0.0
        %429 = vmatprep.subr.mxu0 0.0
        %430 = vmatpush1.msra.mxu0 0.0
        %431 = vmatprep.mubr.f32.mxu0 0.0
        %432 = vmatmul.mubr.f32.gmra.mrb[0].mxu0 %v365
        %v433 = vpop.f32.mrb[0].mxu0
        %v434 = vadd.f32 %v300, %v433
        %v435 = vpop.f32.mrb[0].mxu0
        %436 = vdwg.mxu0
        %v437 = vmax.f32 %v434, 0.0
        %v438 = vld [vmem:[%s3] sm:$0xf]
        %v439 = vld [vmem:[%s4] sm:$0x1]
        %vm440 = vcmask 31744
        %v442 = vsel %vm440, %v437, 0
        %vm444 = vcmask 1043456
        %v446 = vsel %vm444, %v438, 0
        %448 = vmatprep.subr.mxu0 0.0
        %449 = vmatpush1.msra.mxu0 %v446
        %450 = vmatprep.subr.mxu0 0.0
        %451 = vmatpush1.msra.mxu0 0.0
        %452 = vmatprep.subr.mxu0 0.0
        %453 = vmatpush1.msra.mxu0 0.0
        %454 = vmatprep.subr.mxu0 0.0
        %455 = vmatpush1.msra.mxu0 0.0
        %456 = vmatprep.subr.mxu0 0.0
        %457 = vmatpush1.msra.mxu0 0.0
        %458 = vmatprep.subr.mxu0 0.0
        %459 = vmatpush1.msra.mxu0 0.0
        %460 = vmatprep.subr.mxu0 0.0
        %461 = vmatpush1.msra.mxu0 0.0
        %462 = vmatprep.subr.mxu0 0.0
        %463 = vmatpush1.msra.mxu0 0.0
        %464 = vmatprep.subr.mxu0 0.0
        %465 = vmatpush1.msra.mxu0 0.0
        %466 = vmatprep.subr.mxu0 0.0
        %467 = vmatpush1.msra.mxu0 0.0
        %468 = vmatprep.subr.mxu0 0.0
        %469 = vmatpush1.msra.mxu0 0.0
        %470 = vmatprep.subr.mxu0 0.0
        %471 = vmatpush1.msra.mxu0 0.0
        %472 = vmatprep.subr.mxu0 0.0
        %473 = vmatpush1.msra.mxu0 0.0
        %474 = vmatprep.subr.mxu0 0.0
        %475 = vmatpush1.msra.mxu0 0.0
        %476 = vmatprep.subr.mxu0 0.0
        %477 = vmatpush1.msra.mxu0 0.0
        %478 = vmatprep.subr.mxu0 0.0
        %479 = vmatpush1.msra.mxu0 0.0
        %480 = vmatprep.subr.mxu0 0.0
        %481 = vmatpush1.msra.mxu0 0.0
        %482 = vmatprep.subr.mxu0 0.0
        %483 = vmatpush1.msra.mxu0 0.0
        %484 = vmatprep.subr.mxu0 0.0
        %485 = vmatpush1.msra.mxu0 0.0
        %486 = vmatprep.subr.mxu0 0.0
        %487 = vmatpush1.msra.mxu0 0.0
        %488 = vmatprep.subr.mxu0 0.0
        %489 = vmatpush1.msra.mxu0 0.0
        %490 = vmatprep.subr.mxu0 0.0
        %491 = vmatpush1.msra.mxu0 0.0
        %492 = vmatprep.subr.mxu0 0.0
        %493 = vmatpush1.msra.mxu0 0.0
        %494 = vmatprep.subr.mxu0 0.0
        %495 = vmatpush1.msra.mxu0 0.0
        %496 = vmatprep.subr.mxu0 0.0
        %497 = vmatpush1.msra.mxu0 0.0
        %498 = vmatprep.subr.mxu0 0.0
        %499 = vmatpush1.msra.mxu0 0.0
        %500 = vmatprep.subr.mxu0 0.0
        %501 = vmatpush1.msra.mxu0 0.0
        %502 = vmatprep.subr.mxu0 0.0
        %503 = vmatpush1.msra.mxu0 0.0
        %504 = vmatprep.subr.mxu0 0.0
        %505 = vmatpush1.msra.mxu0 0.0
        %506 = vmatprep.subr.mxu0 0.0
        %507 = vmatpush1.msra.mxu0 0.0
        %508 = vmatprep.subr.mxu0 0.0
        %509 = vmatpush1.msra.mxu0 0.0
        %510 = vmatprep.subr.mxu0 0.0
        %511 = vmatpush1.msra.mxu0 0.0
        %512 = vmatprep.mubr.f32.mxu0 0.0
        %513 = vmatmul.mubr.f32.gmra.mrb[0].mxu0 %v442
        %v514 = vpop.f32.mrb[0].mxu0
        %v515 = vadd.f32 %v439, %v514
        %v516 = vpop.f32.mrb[0].mxu0
        %517 = vdwg.mxu0
        %v518 = vxor.u32 %v515, 2147483648
        %v519 = vmul.f32 %v518, 1.442695
        %v520 = vpow.pop %v519
        %v521 = vadd.f32 %v520, 1.0
        %v522 = vrcp.pop %v521
        %v523 = vmul.f32 1.0, %v522
        %v524 = vlaneseq
        %v525 = vshrl.u32 %v524, 7
        %v526 = vsub.s32 0, %v525
        %v527 = vrot.slane %v523, %v526
        %529 = vbcast.lane.b32.xlu0 %v527, 256
        %v530 = vpop.permute.xlu0 %529
        %s532 = sor.u32 256, 8
        %533 = vbcast.lane.b32.xlu0 %v527, %s532
        %v534 = vpop.permute.xlu0 %533
        %s536 = sor.u32 256, 16
        %537 = vbcast.lane.b32.xlu0 %v527, %s536
        %v538 = vpop.permute.xlu0 %537
        %s540 = sor.u32 256, 24
        %541 = vbcast.lane.b32.xlu0 %v527, %s540
        %v542 = vpop.permute.xlu0 %541
        %s544 = sor.u32 256, 32
        %545 = vbcast.lane.b32.xlu0 %v527, %s544
        %v546 = vpop.permute.xlu0 %545
        %s548 = sor.u32 256, 40
        %549 = vbcast.lane.b32.xlu0 %v527, %s548
        %v550 = vpop.permute.xlu0 %549
        %s552 = sor.u32 256, 48
        %553 = vbcast.lane.b32.xlu0 %v527, %s552
        %v554 = vpop.permute.xlu0 %553
        %s556 = sor.u32 256, 56
        %557 = vbcast.lane.b32.xlu0 %v527, %s556
        %v558 = vpop.permute.xlu0 %557
        %v559 = vmul.f32 %v243, %v530
        %v560 = vmul.f32 %v244, %v530
        %v561 = vmul.f32 %v245, %v534
        %v562 = vmul.f32 %v246, %v534
        %v563 = vmul.f32 %v247, %v538
        %v564 = vmul.f32 %v248, %v538
        %v565 = vmul.f32 %v249, %v542
        %v566 = vmul.f32 %v250, %v542
        %v567 = vmul.f32 %v251, %v546
        %v568 = vmul.f32 %v252, %v546
        %v569 = vmul.f32 %v253, %v550
        %v570 = vmul.f32 %v254, %v550
        %v571 = vmul.f32 %v255, %v554
        %v572 = vmul.f32 %v256, %v554
        %v573 = vmul.f32 %v257, %v558
        %v574 = vmul.f32 %v258, %v558
        %575 = vst [vmem:[%s242] sm:$0xff] %v559
        %576 = vst [vmem:[%s242 + $0x8] sm:$0xff] %v560
        %577 = vst [vmem:[%s242 + $0x10] sm:$0xff] %v561
        %578 = vst [vmem:[%s242 + $0x18] sm:$0xff] %v562
        %579 = vst [vmem:[%s242 + $0x20] sm:$0xff] %v563
        %580 = vst [vmem:[%s242 + $0x28] sm:$0xff] %v564
        %581 = vst [vmem:[%s242 + $0x30] sm:$0xff] %v565
        %582 = vst [vmem:[%s242 + $0x38] sm:$0xff] %v566
        %583 = vst [vmem:[%s242 + $0x40] sm:$0xff] %v567
        %584 = vst [vmem:[%s242 + $0x48] sm:$0xff] %v568
        %585 = vst [vmem:[%s242 + $0x50] sm:$0xff] %v569
        %586 = vst [vmem:[%s242 + $0x58] sm:$0xff] %v570
        %587 = vst [vmem:[%s242 + $0x60] sm:$0xff] %v571
        %588 = vst [vmem:[%s242 + $0x68] sm:$0xff] %v572
        %589 = vst [vmem:[%s242 + $0x70] sm:$0xff] %v573
        %590 = vst [vmem:[%s242 + $0x78] sm:$0xff] %v574
        %s591 = sand.u32 %s140, 1
        %s592 = scalar_lea.sflag [#allocation4], %s591
        %s593 = sand.u32 %s140, 1
        %s594 = smul.addr %s593, 128
        %s595 = scalar_lea.vmem [#allocation5], %s594
        // Predicated region
        $region45: #{tpu_custom_call.1} parent=39 // pred_check
          %p596 = pneg %p150
        $region46: #{tpu_custom_call.1} parent=39 // pred_check_branch
          %598 = sbr.rel (%p596) target = $region48
        $region47: #{tpu_custom_call.1} parent=39 // pred_region
          %s600 = ssub.s32 2048, 2048
          %601 = vsyncadd %s592, %s600
          %s602 = smul.addr %s22, 16
          %s603 = smul.addr %s602, 128
          %s604 = scalar_lea.hbm %s5, %s603
          %s605 = sshll.u32 %s595, 4
          %s606 = int_to_ptr.vmem [resolvable:$true] %s605
          %611 = dma.vmem_to_hbm [thread:$0]  %s606, 2048, %s604, %s592, 256, 256, 16
        $region48: #{tpu_custom_call.1} parent=39 // pred_fallthru
          _
      $region40: #{tpu_custom_call.1} parent=5 // pred_fallthru
        _
      %p612 = scmp.le.s32.totalorder 2, %s17
      // Predicated region
      $region49: #{tpu_custom_call.1} parent=5 // pred_check
        %p613 = pneg %p612
      $region50: #{tpu_custom_call.1} parent=5 // pred_check_branch
        %615 = sbr.rel (%p613) target = $region52
      $region51: #{tpu_custom_call.1} parent=5 // pred_region
        %s616 = ssub.s32 %s17, 2
        // Predicated region
        $region53: #{tpu_custom_call.1} parent=51 // pred_check
          %p617 = pneg %p156
        $region54: #{tpu_custom_call.1} parent=51 // pred_check_branch
          %619 = sbr.rel (%p617) target = $region56
        $region55: #{tpu_custom_call.1} parent=51 // pred_region
          %s620 = sand.u32 %s141, 1
          %s621 = scalar_lea.sflag [#allocation4], %s620
          %s622 = sand.u32 %s141, 1
          %s623 = smul.addr %s622, 128
          %s624 = scalar_lea.vmem [#allocation5], %s623
          %625 = dma.done %s621, 2048
        $region56: #{tpu_custom_call.1} parent=51 // pred_fallthru
          _
      $region52: #{tpu_custom_call.1} parent=5 // pred_fallthru
        _
    $region6: #{tpu_custom_call.1} parent=1 // loop_footer
      %s21 = sadd.s32 1, %s17
    $region7: #{tpu_custom_call.1} parent=1 // loop_footer_branch
      %16 = sbr.rel target = $region3
    $region8: #{tpu_custom_call.1} parent=1 // loop_exit
      _
    %626 = vsyncpa [#allocation3], 1
    %s627 = scalar_lea.sflag [#allocation3], 1
    %628 = vsyncpa %s627, 1
    %629 = vsyncpa [#allocation4], 1
    %s630 = scalar_lea.sflag [#allocation4], 1
    %631 = vsyncpa %s630, 1

</llo_original>
